<compile_context>
chip_gen: v5e
topology: v5e:2x2
jax: 0.10.0
libtpu: 0.0.40
codegen_flags: <defaults>
</compile_context>

<pallas_src>
import jax
import jax.numpy as jnp
from jax.experimental import pallas as pl
from jax.experimental.pallas import tpu as pltpu

LANES = 128
SUBLANES = 8
SUB_ROWS = 512          # rows per statically-unrolled in-kernel chunk (256 KiB f32/operand)


def _tpu_hints():
    """Return (parts for the leading 'parallel' grid axis, max tile rows)."""
    kind = ""
    try:
        dev = jax.devices()[0]
        if dev.platform == "tpu":
            kind = dev.device_kind.lower()
    except Exception:
        pass
    # Chips where a leading "parallel" grid axis can land on >1 TensorCore
    # (v7x: 2 TC/chip; v4/v5p: megacore).  They also get the biggest tiles.
    if any(tag in kind for tag in ("v7", "v4", "v5p")):
        return 2, 16384
    # Single-TC v5e / v6e: one part (avoids clamp-duplicated HBM re-reads and
    # per-step masking when rows would otherwise tile cleanly).
    return 1, 8192


def loss1(x: jax.Array, y: jax.Array) -> jax.Array:
    """Equivalent of Loss1.forward: -mean(sum(log(x) * y, dim=2))."""
    assert x.shape == y.shape, "x and y must have the same shape"
    assert x.ndim >= 3, "Loss1 sums over dim=2, so inputs need >= 3 dims"

    n = x.size
    denom = n // x.shape[2]          # number of terms averaged after the dim-2 sum
    assert denom > 0, "inputs must be non-empty"
    neg_inv_denom = -1.0 / float(denom)

    parts_hint, max_tile_rows = _tpu_hints()

    xf = x.reshape(-1)
    yf = y.reshape(-1)

    # Minimal tail pad so the element count is a multiple of 8*128: keeps every
    # row tile (8,128)-aligned and lets the accumulator stay (8,128).  Padding
    # x with 1 (log(1)=0) and y with 0 contributes exactly zero.
    rem = n % (SUBLANES * LANES)
    if rem:
        pad = SUBLANES * LANES - rem
        xf = jnp.pad(xf, (0, pad), constant_values=1)
        yf = jnp.pad(yf, (0, pad), constant_values=0)

    rows = xf.size // LANES          # multiple of 8
    x2 = xf.reshape(rows, LANES)
    y2 = yf.reshape(rows, LANES)

    # Tile / grid derivation (all trace-time Python ints).
    tile_rows = rows if rows <= max_tile_rows else max_tile_rows
    n_blocks = pl.cdiv(rows, tile_rows)
    parts = parts_hint if n_blocks >= parts_hint else 1
    inner = pl.cdiv(n_blocks, parts)

    ragged_last = (n_blocks * tile_rows != rows)   # last block only partially valid
    has_skip = (parts * inner != n_blocks)         # clamp-duplicated trailing blocks
    full_limit = n_blocks - 1 if ragged_last else n_blocks

    if has_skip:
        def in_index_map(p, j):
            # Clamp so the DMA always reads an in-range block; the kernel skips
            # the logically out-of-range blocks so they contribute zero.
            return (jnp.minimum(p * inner + j, n_blocks - 1), 0)
    else:
        def in_index_map(p, j):
            return (p * inner + j, 0)

    def kernel(x_ref, y_ref, o_ref, acc_ref):
        p = pl.program_id(0)
        j = pl.program_id(1)
        b = p * inner + j            # logical (unclamped) block index

        @pl.when(j == 0)
        def _init():
            acc_ref[...] = jnp.zeros_like(acc_ref)

        def tile_partial(masked):
            # Statically unrolled chunked reduction: bounds live intermediates
            # to SUB_ROWS x 128 and accumulates with cross-vreg VALU adds into
            # an (8, 128) value (no XLU, no big accumulator read-modify-write).
            acc = jnp.zeros((SUBLANES, LANES), jnp.float32)
            r = 0
            while r < tile_rows:
                c = min(SUB_ROWS, tile_rows - r)          # always a multiple of 8
                xv = x_ref[r:r + c, :].astype(jnp.float32)
                yv = y_ref[r:r + c, :].astype(jnp.float32)
                contrib = jnp.log(xv) * yv
                if masked:
                    row_idx = (b * tile_rows + r) + jax.lax.broadcasted_iota(
                        jnp.int32, (c, LANES), 0)
                    contrib = jnp.where(row_idx < rows, contrib, 0.0)
                acc = acc + jnp.sum(
                    contrib.reshape(c // SUBLANES, SUBLANES, LANES), axis=0)
                r += c
            return acc

        if ragged_last or has_skip:
            # Fully valid blocks run the unmasked fast path; only the single
            # ragged last block pays for the mask; clamp-duplicated blocks are
            # skipped entirely.
            @pl.when(b < full_limit)
            def _full():
                acc_ref[...] += tile_partial(masked=False)

            if ragged_last:
                @pl.when(b == n_blocks - 1)
                def _last():
                    acc_ref[...] += tile_partial(masked=True)
        else:
            acc_ref[...] += tile_partial(masked=False)

        @pl.when(j == inner - 1)
        def _finalize():
            partial = jnp.sum(acc_ref[...]) * neg_inv_denom
            o_ref[...] = jnp.zeros(o_ref.shape, jnp.float32) + partial

    in_bytes = x2.size * x2.dtype.itemsize + y2.size * y2.dtype.itemsize
    out_bytes = parts * SUBLANES * LANES * 4
    # Double-buffered input tiles + headroom for in-kernel chunk temporaries.
    tile_in_bytes = 2 * 2 * tile_rows * LANES * x2.dtype.itemsize
    vmem_limit = int(max(32 * 1024 * 1024, tile_in_bytes + 16 * 1024 * 1024))

    out = pl.pallas_call(
        kernel,
        out_shape=jax.ShapeDtypeStruct((parts, SUBLANES, LANES), jnp.float32),
        grid_spec=pltpu.PrefetchScalarGridSpec(
            num_scalar_prefetch=0,
            grid=(parts, inner),
            in_specs=[
                pl.BlockSpec((tile_rows, LANES), in_index_map),
                pl.BlockSpec((tile_rows, LANES), in_index_map),
            ],
            out_specs=pl.BlockSpec((1, SUBLANES, LANES), lambda p, j: (p, 0, 0)),
            scratch_shapes=[pltpu.VMEM((SUBLANES, LANES), jnp.float32)],
        ),
        compiler_params=pltpu.CompilerParams(
            dimension_semantics=("parallel", "arbitrary"),
            vmem_limit_bytes=vmem_limit,
        ),
        cost_estimate=pl.CostEstimate(
            flops=2 * n, transcendentals=n,
            bytes_accessed=in_bytes + out_bytes),
    )(x2, y2)

    # Each part wrote its (already negated & scaled) partial everywhere in its
    # (8, 128) output block; read one lane per part and sum.
    return jnp.sum(out[:, 0, 0])


if __name__ == "__main__":
    key = jax.random.PRNGKey(0)

    def ref_loss(x, y):
        return -jnp.mean(jnp.sum(jnp.log(x) * y, axis=2))

    def check(shape, rtol, atol, key):
        k1, k2, key = jax.random.split(key, 3)
        xx = jax.nn.softmax(jax.random.normal(k1, shape, jnp.float32), axis=-1)
        yy = jax.nn.softmax(jax.random.normal(k2, shape, jnp.float32), axis=-1)
        got = loss1(xx, yy)
        jax.block_until_ready(got)
        want = ref_loss(xx, yy)
        assert jnp.allclose(got, want, rtol=rtol, atol=atol), (shape, got, want)
        return key

    # (batch, seq, classes) shapes implied by the LSTM classification loss.
    key = check((2, 8, 32), 1e-5, 1e-6, key)      # single small tile
    key = check((2, 3, 7), 1e-5, 1e-6, key)       # element count not /128: tail pad
    key = check((8, 300, 200), 1e-4, 1e-5, key)   # multi-chunk single tile
    key = check((16, 520, 200), 1e-4, 1e-5, key)  # multi-block grid + ragged last tile

    print("KERNEL_OK")
</pallas_src>

<mosaic_0001>
module attributes {stable_mosaic.version = 11 : i64} {
  func.func @kernel(%arg0: i32, %arg1: i32, %arg2: memref<8x128xf32, #tpu.memory_space<vmem>>, %arg3: memref<8x128xf32, #tpu.memory_space<vmem>>, %arg4: memref<1x8x128xf32, #tpu.memory_space<vmem>>, %arg5: memref<8x128xf32, #tpu.memory_space<vmem>>) attributes {dimension_semantics = [#tpu.dimension_semantics<parallel>, #tpu.dimension_semantics<arbitrary>], iteration_bounds = array<i64: 1, 1>, scalar_prefetch = 0 : i64, scratch_operands = 1 : i64, tpu.core_type = #tpu.core_type<tc>, window_params = [{transform_indices = @transform_0, window_bounds = array<i64: 8, 128>}, {transform_indices = @transform_1, window_bounds = array<i64: 8, 128>}, {transform_indices = @transform_2, window_bounds = array<i64: 1, 8, 128>}]} {
    %c0_i32 = arith.constant 0 : i32
    %0 = arith.cmpi eq, %arg1, %c0_i32 : i32
    %1 = arith.extui %0 : i1 to i32
    %c0_i32_0 = arith.constant 0 : i32
    %2 = arith.cmpi ne, %1, %c0_i32_0 : i32
    scf.if %2 {
      %cst_11 = arith.constant 0.000000e+00 : f32
      %17 = vector.broadcast %cst_11 : f32 to vector<8x128xf32>
      %c0_12 = arith.constant 0 : index
      %c0_13 = arith.constant 0 : index
      %18 = vector.load %arg5[%c0_12, %c0_13] : memref<8x128xf32, #tpu.memory_space<vmem>>, vector<8x128xf32>
      tpu.vector_store %arg5[%c0_12, %c0_13], %17 {strides = array<i32>} : memref<8x128xf32, #tpu.memory_space<vmem>>, vector<8x128xf32>,
    } else {
    }
    %c0 = arith.constant 0 : index
    %c0_1 = arith.constant 0 : index
    %3 = vector.load %arg5[%c0, %c0_1] : memref<8x128xf32, #tpu.memory_space<vmem>>, vector<8x128xf32>
    %cst = arith.constant 0.000000e+00 : f32
    %4 = vector.broadcast %cst : f32 to vector<8x128xf32>
    %c0_2 = arith.constant 0 : index
    %c0_3 = arith.constant 0 : index
    %5 = vector.load %arg2[%c0_2, %c0_3] : memref<8x128xf32, #tpu.memory_space<vmem>>, vector<8x128xf32>
    %c0_4 = arith.constant 0 : index
    %c0_5 = arith.constant 0 : index
    %6 = vector.load %arg3[%c0_4, %c0_5] : memref<8x128xf32, #tpu.memory_space<vmem>>, vector<8x128xf32>
    %7 = math.log %5 : vector<8x128xf32>
    %8 = arith.mulf %7, %6 : vector<8x128xf32>
    %9 = vector.shape_cast %8 : vector<8x128xf32> to vector<1x8x128xf32>
    %cst_6 = arith.constant dense<0.000000e+00> : vector<8x128xf32>
    %10 = vector.multi_reduction <add>, %9, %cst_6 [0] : vector<1x8x128xf32> to vector<8x128xf32>
    %11 = arith.addf %4, %10 : vector<8x128xf32>
    %12 = arith.addf %3, %11 : vector<8x128xf32>
    %c0_7 = arith.constant 0 : index
    %c0_8 = arith.constant 0 : index
    %13 = vector.load %arg5[%c0_7, %c0_8] : memref<8x128xf32, #tpu.memory_space<vmem>>, vector<8x128xf32>
    tpu.vector_store %arg5[%c0_7, %c0_8], %12 {strides = array<i32>} : memref<8x128xf32, #tpu.memory_space<vmem>>, vector<8x128xf32>,
    %c0_i32_9 = arith.constant 0 : i32
    %14 = arith.cmpi eq, %arg1, %c0_i32_9 : i32
    %15 = arith.extui %14 : i1 to i32
    %c0_i32_10 = arith.constant 0 : i32
    %16 = arith.cmpi ne, %15, %c0_i32_10 : i32
    scf.if %16 {
      %c0_11 = arith.constant 0 : index
      %c0_12 = arith.constant 0 : index
      %17 = vector.load %arg5[%c0_11, %c0_12] : memref<8x128xf32, #tpu.memory_space<vmem>>, vector<8x128xf32>
      %18 = vector.shape_cast %17 : vector<8x128xf32> to vector<1x8x128xf32>
      %cst_13 = arith.constant dense<0.000000e+00> : vector<1xf32>
      %19 = vector.multi_reduction <add>, %18, %cst_13 [1, 2] : vector<1x8x128xf32> to vector<1xf32>
      %20 = vector.shape_cast %19 : vector<1xf32> to vector<1x1x1xf32>
      %21 = vector.extract %20[0, 0, 0] : f32 from vector<1x1x1xf32>
      %cst_14 = arith.constant -6.250000e-02 : f32
      %22 = arith.mulf %21, %cst_14 : f32
      %cst_15 = arith.constant 0.000000e+00 : f32
      %23 = vector.broadcast %cst_15 : f32 to vector<1x8x128xf32>
      %24 = vector.broadcast %22 : f32 to vector<1x8x128xf32>
      %25 = arith.addf %23, %24 : vector<1x8x128xf32>
      %c0_16 = arith.constant 0 : index
      %c0_17 = arith.constant 0 : index
      %c0_18 = arith.constant 0 : index
      %26 = vector.load %arg4[%c0_16, %c0_17, %c0_18] : memref<1x8x128xf32, #tpu.memory_space<vmem>>, vector<1x8x128xf32>
      tpu.vector_store %arg4[%c0_16, %c0_17, %c0_18], %25 {strides = array<i32>} : memref<1x8x128xf32, #tpu.memory_space<vmem>>, vector<1x8x128xf32>,
    } else {
    }
    return
  }
  func.func @transform_0(%arg0: i32, %arg1: i32) -> (i32, i32) {
    %c1_i32 = arith.constant 1 : i32
    %0 = arith.muli %arg0, %c1_i32 : i32
    %1 = arith.addi %0, %arg1 : i32
    %c0_i32 = arith.constant 0 : i32
    %c0_i32_0 = arith.constant 0 : i32
    return %1, %c0_i32 : i32, i32
  }
  func.func @transform_1(%arg0: i32, %arg1: i32) -> (i32, i32) {
    %c1_i32 = arith.constant 1 : i32
    %0 = arith.muli %arg0, %c1_i32 : i32
    %1 = arith.addi %0, %arg1 : i32
    %c0_i32 = arith.constant 0 : i32
    %c0_i32_0 = arith.constant 0 : i32
    return %1, %c0_i32 : i32, i32
  }
  func.func @transform_2(%arg0: i32, %arg1: i32) -> (i32, i32, i32) {
    %c0_i32 = arith.constant 0 : i32
    %c0_i32_0 = arith.constant 0 : i32
    %c0_i32_1 = arith.constant 0 : i32
    return %arg0, %c0_i32, %c0_i32_0 : i32, i32, i32
  }
}

</mosaic_0001>

<llo_original>
// kernel: tpu_custom_call.1
$region0: #{tpu_custom_call.1}
  #allocation0 [shape = 'u32[]', space=smem, size = 0x4, offset = 0x4, fixed_abs, tag = 'smem constant byte address 0x4 - core index']
  #allocation1 [shape = 'u32[72,128]{1,0:T(1,128)}', space=vmem, size = 0x9000, scoped, tag = 'internal scratch']
  #allocation2 [shape = 'f32[8,128]{1,0:T(8,128)}', space=vmem, size = 0x1000, scoped, tag = 'scratch operand']
  %s0 = inlined_call_operand.hbm [shape: f32[8,128], index: 0, kind: input, shape index: {}]
  %s1 = inlined_call_operand.hbm [shape: f32[8,128], index: 1, kind: input, shape index: {}]
  %s2 = inlined_call_operand.hbm [shape: f32[1,8,128], index: 2, kind: output, shape index: {}]
  %s3 = sld [smem:[#allocation0]]
  $region34: #{tpu_custom_call.1} parent=0
    _
  %s5 = ssub.s32 1, %s3
  %s6 = scalar_select 0, %s5, %s3
  $region1: #{tpu_custom_call.1} parent=0
    #allocation3 [shape = 'u8[4096]{0}', space=vmem, size = 0x1000, scoped, tag = 'input window, operand 0, single buffered']
    #allocation4 [shape = 's32[1]{0}', space=sflag, size = 0x4, scoped, tag = 'scoped memory for tpu_custom_call.1']
    #allocation5 [shape = 's32[1]{0}', space=sflag, size = 0x4, scoped, tag = 'scoped memory for tpu_custom_call.1']
    #allocation6 [shape = 'u8[4096]{0}', space=vmem, size = 0x1000, scoped, tag = 'input window, operand 1, single buffered']
    #allocation7 [shape = 's32[1]{0}', space=sflag, size = 0x4, scoped, tag = 'scoped memory for tpu_custom_call.1']
    #allocation8 [shape = 'u8[4096]{0}', space=vmem, size = 0x1000, scoped, tag = 'output window, operand 0, single buffered']
    %7 = vsyncpa [#allocation4], 0
    %8 = vsyncpa [#allocation7], 0
    %9 = vsyncpa [#allocation5], 0
    // Predicated region
    $region2: #{tpu_custom_call.1} parent=1 // pred_check
      _
    $region3: #{tpu_custom_call.1} parent=1 // pred_check_branch
      %11 = sbr.rel (0) target = $region5
    $region4: #{tpu_custom_call.1} parent=1 // pred_region
      %s12 = sadd.s32 0, 0
      %14 = vsyncadd [#allocation4], 0
      %s15 = smul.addr %s12, 8
      %s16 = scalar_lea.hbm %s0, %s15
      %s18 = sshll.u32 %s16, 4
      %s19 = int_to_ptr.hbm [resolvable:$true] %s18
      %s20 = sshll.u32 [#allocation3], 4
      %s21 = int_to_ptr.vmem [resolvable:$true] %s20
      %23 = dma.hbm_to_vmem [thread:$0]  %s19, 128, %s21, [#allocation4]
    $region5: #{tpu_custom_call.1} parent=1 // pred_fallthru
      _
    // Predicated region
    $region6: #{tpu_custom_call.1} parent=1 // pred_check
      _
    $region7: #{tpu_custom_call.1} parent=1 // pred_check_branch
      %25 = sbr.rel (0) target = $region9
    $region8: #{tpu_custom_call.1} parent=1 // pred_region
      %s26 = sadd.s32 0, 0
      %28 = vsyncadd [#allocation7], 0
      %s29 = smul.addr %s26, 8
      %s30 = scalar_lea.hbm %s1, %s29
      %s32 = sshll.u32 %s30, 4
      %s33 = int_to_ptr.hbm [resolvable:$true] %s32
      %s34 = sshll.u32 [#allocation6], 4
      %s35 = int_to_ptr.vmem [resolvable:$true] %s34
      %37 = dma.hbm_to_vmem [thread:$0]  %s33, 128, %s35, [#allocation7]
    $region9: #{tpu_custom_call.1} parent=1 // pred_fallthru
      _
    // Predicated region
    $region10: #{tpu_custom_call.1} parent=1 // pred_check
      _
    $region11: #{tpu_custom_call.1} parent=1 // pred_check_branch
      %39 = sbr.rel (0) target = $region13
    $region12: #{tpu_custom_call.1} parent=1 // pred_region
      %41 = dma.done [#allocation4], 128
    $region13: #{tpu_custom_call.1} parent=1 // pred_fallthru
      _
    // Predicated region
    $region14: #{tpu_custom_call.1} parent=1 // pred_check
      _
    $region15: #{tpu_custom_call.1} parent=1 // pred_check_branch
      %43 = sbr.rel (0) target = $region17
    $region16: #{tpu_custom_call.1} parent=1 // pred_region
      %45 = dma.done [#allocation7], 128
    $region17: #{tpu_custom_call.1} parent=1 // pred_fallthru
      _
    %s46 = sadd.s32 0, 0
    %s47 = sadd.s32 0, 0
    %p48 = scmp.eq.s32.totalorder 0, 0
    // Predicated region
    $region18: #{tpu_custom_call.1} parent=1 // pred_check
      %p49 = pneg %p48
    $region19: #{tpu_custom_call.1} parent=1 // pred_check_branch
      %51 = sbr.rel (%p49) target = $region21
    $region20: #{tpu_custom_call.1} parent=1 // pred_region
      %52 = vst [vmem:[#allocation2] sm:$0xff] 0.0
    $region21: #{tpu_custom_call.1} parent=1 // pred_fallthru
      _
    %v53 = vld [vmem:[#allocation2] sm:$0xff]
    %v54 = vld [vmem:[#allocation3] sm:$0xff]
    %v55 = vld [vmem:[#allocation6] sm:$0xff]
    %v56 = vlog2.pop %v54
    %v57 = vmul.f32 %v56, 0.6931472
    %v58 = vmul.f32 %v57, %v55
    %v59 = vadd.f32 %v58, 0.0
    %v60 = vadd.f32 %v59, 0.0
    %v61 = vadd.f32 %v53, %v60
    %62 = vst [vmem:[#allocation2] sm:$0xff] %v61
    // Predicated region
    $region22: #{tpu_custom_call.1} parent=1 // pred_check
      %p63 = pneg %p48
    $region23: #{tpu_custom_call.1} parent=1 // pred_check_branch
      %65 = sbr.rel (%p63) target = $region25
    $region24: #{tpu_custom_call.1} parent=1 // pred_region
      %v66 = vld [vmem:[#allocation2] sm:$0xff]
      %67 = vadd.xlane.f32.xlu0 %v66
      %v68 = vpop.xlane.xlu0 %67
      %v69 = vrot.slane %v68, 4
      %v70 = vadd.f32 %v68, %v69
      %v71 = vrot.slane %v70, 2
      %v72 = vadd.f32 %v70, %v71
      %v73 = vrot.slane %v72, 1
      %v74 = vadd.f32 %v72, %v73
      %s75 = vtos %v74
      %s76 = smul.f32 %s75, -0.0625
      %v77 = vstv %s76
      %v78 = vadd.f32 %v77, 0.0
      %79 = vst [vmem:[#allocation8] sm:$0xff] %v78
    $region25: #{tpu_custom_call.1} parent=1 // pred_fallthru
      _
    // Predicated region
    $region26: #{tpu_custom_call.1} parent=1 // pred_check
      _
    $region27: #{tpu_custom_call.1} parent=1 // pred_check_branch
      %81 = sbr.rel (0) target = $region29
    $region28: #{tpu_custom_call.1} parent=1 // pred_region
      %83 = vsyncadd [#allocation5], 0
      %s85 = sshll.u32 [#allocation8], 4
      %s86 = int_to_ptr.vmem [resolvable:$true] %s85
      %s87 = sshll.u32 %s2, 4
      %s88 = int_to_ptr.hbm [resolvable:$true] %s87
      %90 = dma.vmem_to_hbm [thread:$0]  %s86, 128, %s88, [#allocation5]
    $region29: #{tpu_custom_call.1} parent=1 // pred_fallthru
      _
    // Predicated region
    $region30: #{tpu_custom_call.1} parent=1 // pred_check
      _
    $region31: #{tpu_custom_call.1} parent=1 // pred_check_branch
      %92 = sbr.rel (0) target = $region33
    $region32: #{tpu_custom_call.1} parent=1 // pred_region
      %94 = dma.done [#allocation5], 128
    $region33: #{tpu_custom_call.1} parent=1 // pred_fallthru
      _
    %95 = vsyncpa [#allocation4], 1
    %96 = vsyncpa [#allocation7], 1
    %97 = vsyncpa [#allocation5], 1

</llo_original>
